<compile_context>
chip_gen: v7x
topology: tpu7x:2x2x1
jax: 0.10.0
libtpu: 0.0.40
codegen_flags: <defaults>
</compile_context>

<pallas_src>
import jax
import jax.numpy as jnp
import numpy as np
from jax import lax  # noqa: F401
from jax.experimental import pallas as pl
from jax.experimental.pallas import tpu as pltpu

# ----------------------------- configuration --------------------------------
BATCH = 2
SEQ_IN = 24          # must be a multiple of 24 (SFF periods 3/6/12/24)
SEQ_OUT = 24
IN_FEATURES = 4
HIDDEN = 32
OUT = 3              # forward slices x[:, :, :3] -> out_features must be 3
BACKBONE_UNITS = 32
CHUNK = 6
PERIODS = (3, 6, 12, 24)


# ------------------------- LeCun activation (spec) ---------------------------
def _lecun_kernel(x_ref, o_ref):
    o_ref[...] = 1.7159 * jnp.tanh(0.666 * x_ref[...])


def lecun_apply(x):
    """Standalone Pallas kernel for the `LeCun` module: 1.7159*tanh(0.666*x).

    Tiled over a 2D grid with lane-dense blocks so it double-buffers
    HBM<->VMEM for large inputs instead of forcing whole-array residency."""
    orig_shape = x.shape
    x2 = x.reshape(-1, orig_shape[-1]) if x.ndim >= 2 else x.reshape(1, -1)
    R, C = x2.shape
    TR = R if R <= 512 else 512          # full dim, or a multiple of 8
    TC = C if C <= 1024 else 1024        # full dim, or a multiple of 128
    y2 = pl.pallas_call(
        _lecun_kernel,
        out_shape=jax.ShapeDtypeStruct((R, C), x.dtype),
        grid=(pl.cdiv(R, TR), pl.cdiv(C, TC)),
        in_specs=[pl.BlockSpec((TR, TC), lambda i, j: (i, j))],
        out_specs=pl.BlockSpec((TR, TC), lambda i, j: (i, j)),
        compiler_params=pltpu.CompilerParams(
            dimension_semantics=("parallel", "parallel")),
    )(x2)
    return y2.reshape(orig_shape)


# --------------------------- fused Cfc forward kernel ------------------------
def _full_block(shape):
    nd = len(shape)
    return pl.BlockSpec(shape, lambda i, _nd=nd: (0,) * _nd)


def _cfc_fused_kernel(xl_ref, a1t_ref, a23t_ref, wx_ref, wh_ref, bb_ref,
                      wgate_ref, bgate_ref, fcw_ref, fcb_ref,
                      fc2wt_ref, fc2b_ref, o_ref):
    # Load all (tiny) weights once; they stay in vregs/VMEM for the whole call.
    a1t = a1t_ref[...]        # [S_in, S_in]        left-multiplies [S, B*F]
    a23t = a23t_ref[...]      # [S_out+S_in, S_in]  (A2.T stacked on A3.T)
    wx = wx_ref[...]          # [F, U]
    wh = wh_ref[...]          # [H, U]
    bb = bb_ref[...]          # [1, U]
    wgate = wgate_ref[...]    # [U, 4H] = [32, 128]  (ff1|ff2|t_a|t_b fused)
    bgate = bgate_ref[...]    # [1, 4H]
    fcw = fcw_ref[...]        # [H, OUT]
    fcb = fcb_ref[...]        # [1, OUT]
    fc2wt = fc2wt_ref[...]    # [S_out, S_in]  left-multiplies [S_in, B*OUT]
    fc2b = fc2b_ref[...]      # [S_out, 1]

    xl = xl_ref[...]          # [S, B*F]  lane-stacked input (time x batch*feat)
    S, BF = xl.shape
    F = IN_FEATURES
    B = BF // F
    H = wh.shape[0]
    L = CHUNK
    BL = B * L
    n_chunks = S // L
    n_day = 24 // L           # chunks per day (cross-day memory slots)

    def lecun(z):             # the spec module
        return 1.7159 * jnp.tanh(0.666 * z)

    # ---- SFF stage, both batch elements in one lane-stacked matmul each ----
    m = jnp.mean(xl, axis=0, keepdims=True)                          # [1, B*F]
    y1 = jnp.dot(a1t, xl - m, preferred_element_type=jnp.float32)    # [S, B*F]
    xs = jnp.concatenate([y1[:, b * F:b * F + OUT] for b in range(B)],
                         axis=1)                                     # [S, B*3]
    x23 = jnp.dot(a23t, xs, preferred_element_type=jnp.float32)      # [So+S, B*3]
    x2 = x23[:SEQ_OUT]                                               # [S_out, B*3]
    x3 = x23[SEQ_OUT:]                                               # [S_in,  B*3]

    # ---- hoisted backbone x-projection, rows pre-ordered chunk-major so the
    #      recurrence can slice [B*L, U] blocks directly (off the serial path).
    y1_fold = jnp.concatenate(
        [y1[c * L:(c + 1) * L, b * F:(b + 1) * F]
         for c in range(n_chunks) for b in range(B)], axis=0)        # [nc*B*L, F]
    xp = jnp.dot(y1_fold, wx, preferred_element_type=jnp.float32) + bb  # [nc*BL, U]

    # Hoisted bias broadcast (JAX does not CSE broadcast_in_dim).
    bgate_bc = jnp.broadcast_to(bgate, (BL, bgate.shape[1]))         # [B*L, 4H]

    # ---- chunked CfcCell recurrence, batch folded into sublanes ----
    zero = jnp.zeros((BL, H), jnp.float32)
    h = zero
    h_last = [zero] * n_day
    h_last2 = [zero] * n_day
    h_last3 = [zero] * n_day
    hs = []
    for c in range(n_chunks):
        d = c % n_day
        h_in = h + h_last[d] + 0.5 * h_last2[d] + 0.3 * h_last3[d]
        z = xp[c * BL:(c + 1) * BL, :] + jnp.dot(
            h_in, wh, preferred_element_type=jnp.float32)            # [B*L, U]
        z = lecun(z)
        # One lane-dense [B*L,32]@[32,128] push for ff1|ff2|t_a|t_b.
        g = jnp.dot(z, wgate, preferred_element_type=jnp.float32) + bgate_bc
        ff = jnp.tanh(g[:, :2 * H])          # ff1 and ff2 in one EUP push
        ff1 = ff[:, :H]
        ff2 = ff[:, H:]
        # timespans == 1  ->  t_interp = sigmoid(t_a * 1 + t_b)
        t_interp = jax.nn.sigmoid(g[:, 2 * H:3 * H] + g[:, 3 * H:4 * H])
        h = ff1 + t_interp * (ff2 - ff1)
        # nn.Dropout(0.15) -> identity at inference
        hs.append(h)
        if (c + 1) * L < S:                  # original: `if i + L < S`
            h_last[(d + 1) % n_day] = h
            h_last2[(d + 2) % n_day] = h
            h_last3[(d + 3) % n_day] = h

    # ---- readout: fc, residual x3, fc2, residual mean + x2 ----
    # Batch-major, time-ordered [B*S, H] readout built from registers (no VMEM
    # scratch round-trip).
    readout = jnp.concatenate(
        [hs[c][b * L:(b + 1) * L] for b in range(B) for c in range(n_chunks)],
        axis=0)                                                       # [B*S, H]
    x3_stack = jnp.concatenate([x3[:, b * OUT:(b + 1) * OUT] for b in range(B)],
                               axis=0)                                # [B*S, 3]
    r = jnp.dot(readout, fcw, preferred_element_type=jnp.float32) \
        + fcb + x3_stack                                              # [B*S, 3]
    r_lane = jnp.concatenate([r[b * S:(b + 1) * S] for b in range(B)],
                             axis=1)                                  # [S, B*3]
    out = jnp.dot(fc2wt, r_lane, preferred_element_type=jnp.float32) + fc2b
    m3 = jnp.concatenate([m[:, b * F:b * F + OUT] for b in range(B)], axis=1)
    final = out + x2 + m3                                             # [S_out, B*3]
    for b in range(B):
        o_ref[b] = final[:, b * OUT:(b + 1) * OUT]


def cfc_forward(x, params):
    """x: [B, 1, F, S_in]  ->  [B, S_out, 3]   (one fused pallas_call)."""
    B = x.shape[0]
    # Module's own layout ops (squeeze + permute), plus lane-stacking of the
    # batch so the kernel sees [S, B*F]: x_lane[s, b*F+f] = x[b, 0, f, s].
    x_lane = jnp.transpose(x[:, 0], (2, 0, 1)).reshape(SEQ_IN, B * IN_FEATURES)
    x_lane = x_lane.astype(jnp.float32)
    args = (x_lane, params["a1t"], params["a23t"], params["wx"], params["wh"],
            params["bb"], params["wgate"], params["bgate"], params["fc_w"],
            params["fc_b"], params["fc2_wt"], params["fc2_b"])
    return pl.pallas_call(
        _cfc_fused_kernel,
        out_shape=jax.ShapeDtypeStruct((B, SEQ_OUT, OUT), jnp.float32),
        grid=(1,),
        in_specs=[_full_block(a.shape) for a in args],
        out_specs=_full_block((B, SEQ_OUT, OUT)),
        compiler_params=pltpu.CompilerParams(
            dimension_semantics=("arbitrary",)),
    )(*args)


# -------------------------- parameter construction --------------------------
def _uniform(key, shape, bound):
    return jax.random.uniform(key, shape, jnp.float32, -bound, bound)


def _lin_init(key, out_dim, in_dim):
    kw, kb = jax.random.split(key)
    bound = 1.0 / np.sqrt(in_dim)
    return _uniform(kw, (out_dim, in_dim), bound), _uniform(kb, (out_dim,), bound)


def build_sff_matrix(conv_w, lin_w, seq_len, pred_len, period):
    """Fold SFF (conv1d + residual + per-phase segment Linear) into one
    [seq_len, pred_len] matrix acting on the time axis of a row vector."""
    K = conv_w.shape[0]
    p = period // 2
    t = jnp.arange(seq_len)[:, None]
    s = jnp.arange(seq_len)[None, :]
    d = s - t + p
    valid = (d >= 0) & (d < K)
    C = jnp.where(valid, conv_w[jnp.clip(d, 0, K - 1)], 0.0)      # out = C @ x
    conv_plus_res = C.T + jnp.eye(seq_len, dtype=jnp.float32)     # x @ (C.T+I)
    i_idx = jnp.arange(seq_len)
    o_idx = jnp.arange(pred_len)
    in_seg, in_ph = i_idx // period, i_idx % period
    out_seg, out_ph = o_idx // period, o_idx % period
    S = jnp.where(in_ph[:, None] == out_ph[None, :],
                  lin_w[out_seg[None, :], in_seg[:, None]], 0.0)  # [seq, pred]
    return conv_plus_res @ S


def init_sff(key, seq_len, pred_len, period):
    K = 1 + 2 * (period // 2)
    k1, k2 = jax.random.split(key)
    conv_w = _uniform(k1, (K,), 1.0 / np.sqrt(K))
    seg_x = seq_len // period
    seg_y = pred_len // period
    lin_w = _uniform(k2, (seg_y, seg_x), 1.0 / np.sqrt(seg_x))
    return build_sff_matrix(conv_w, lin_w, seq_len, pred_len, period)


def init_cell(key, F, H, U):
    ks = jax.random.split(key, 5)
    Wbb, bbb = _lin_init(ks[0], U, F + H)
    Wff1, bff1 = _lin_init(ks[1], H, U)
    Wff2, bff2 = _lin_init(ks[2], H, U)
    Wta, bta = _lin_init(ks[3], H, U)
    Wtb, btb = _lin_init(ks[4], H, U)
    # Fused gate weight: one [U, 4H] matrix -> single lane-dense MXU push.
    wgate = jnp.concatenate([Wff1.T, Wff2.T, Wta.T, Wtb.T], axis=1)
    bgate = jnp.concatenate([bff1, bff2, bta, btb]).reshape(1, 4 * H)
    return dict(wx=Wbb[:, :F].T, wh=Wbb[:, F:].T, bb=bbb.reshape(1, U),
                wgate=wgate, bgate=bgate)


def init_params(key):
    keys = jax.random.split(key, 6)

    def group(k, seq_len, pred_len):
        ks = jax.random.split(k, len(PERIODS))
        acc = jnp.zeros((seq_len, pred_len), jnp.float32)
        for kk, p in zip(ks, PERIODS):
            acc = acc + init_sff(kk, seq_len, pred_len, p)
        return 0.25 * acc

    A1 = group(keys[0], SEQ_IN, SEQ_IN)     # tsf_period1_* (4-period average)
    A2 = group(keys[1], SEQ_IN, SEQ_OUT)    # tsf_period2_*
    A3 = group(keys[2], SEQ_IN, SEQ_IN)     # tsf_period3_*
    params = init_cell(keys[3], IN_FEATURES, HIDDEN, BACKBONE_UNITS)
    Wfc, bfc = _lin_init(keys[4], OUT, HIDDEN)
    Wfc2, bfc2 = _lin_init(keys[5], SEQ_OUT, SEQ_IN)

    # Pre-transposed layouts so the kernel needs no in-kernel transposes.
    params["a1t"] = A1.T                                       # [S_in, S_in]
    params["a23t"] = jnp.concatenate([A2.T, A3.T], axis=0)     # [S_out+S_in, S_in]
    params["fc_w"] = Wfc.T                                     # [H, OUT]
    params["fc_b"] = bfc.reshape(1, OUT)
    params["fc2_wt"] = Wfc2                                    # [S_out, S_in]
    params["fc2_b"] = bfc2.reshape(SEQ_OUT, 1)
    return params


# ------------------------------ pure-JAX reference ---------------------------
def cfc_forward_ref(x, params):
    """Reference (no Pallas) with identical math; used to validate the kernel."""
    xb = jnp.transpose(x[:, 0], (0, 2, 1)).astype(jnp.float32)     # [B, S, F]
    m = jnp.mean(xb, axis=1, keepdims=True)
    y1 = jnp.einsum("ts,bsf->btf", params["a1t"], xb - m)
    xs = y1[..., :OUT]
    x23 = jnp.einsum("ps,bsf->bpf", params["a23t"], xs)
    x2, x3 = x23[:, :SEQ_OUT], x23[:, SEQ_OUT:]
    xp = jnp.einsum("bsf,fu->bsu", y1, params["wx"]) + params["bb"]
    B, S, _ = y1.shape
    L, H = CHUNK, HIDDEN
    n_day = 24 // L
    zero = jnp.zeros((B, L, H), jnp.float32)
    h = zero
    hl, hl2, hl3 = [zero] * n_day, [zero] * n_day, [zero] * n_day
    outs = []
    for c in range(S // L):
        d = c % n_day
        h_in = h + hl[d] + 0.5 * hl2[d] + 0.3 * hl3[d]
        z = xp[:, c * L:(c + 1) * L] + jnp.einsum("blh,hu->blu", h_in, params["wh"])
        z = 1.7159 * jnp.tanh(0.666 * z)
        g = jnp.einsum("blu,uk->blk", z, params["wgate"]) + params["bgate"]
        ff1, ff2 = jnp.tanh(g[..., :H]), jnp.tanh(g[..., H:2 * H])
        ti = jax.nn.sigmoid(g[..., 2 * H:3 * H] + g[..., 3 * H:])
        h = ff1 * (1.0 - ti) + ti * ff2
        outs.append(h)
        if (c + 1) * L < S:
            hl[(d + 1) % n_day] = h
            hl2[(d + 2) % n_day] = h
            hl3[(d + 3) % n_day] = h
    readout = jnp.concatenate(outs, axis=1)                        # [B, S, H]
    r = jnp.einsum("bsh,ho->bso", readout, params["fc_w"]) + params["fc_b"] + x3
    out = jnp.einsum("ps,bso->bpo", params["fc2_wt"], r) + params["fc2_b"]
    return out + m[..., :OUT] + x2


# ----------------------------------- main ------------------------------------
if __name__ == "__main__":
    key = jax.random.PRNGKey(0)
    pkey, xkey, lkey = jax.random.split(key, 3)
    params = init_params(pkey)
    x = jax.random.normal(xkey, (BATCH, 1, IN_FEATURES, SEQ_IN), jnp.float32)

    # 1) Standalone LeCun-module kernel check (tiled pallas_call).
    z = jax.random.normal(lkey, (8, 128), jnp.float32)
    y = jax.block_until_ready(jax.jit(lecun_apply)(z))
    assert jnp.allclose(y, 1.7159 * jnp.tanh(0.666 * z), atol=1e-5, rtol=1e-5)

    # 2) Fully fused Cfc forward (single pallas_call) vs. pure-JAX reference.
    fwd = jax.jit(cfc_forward)
    out = jax.block_until_ready(fwd(x, params))
    assert out.shape == (BATCH, SEQ_OUT, OUT), out.shape
    assert bool(jnp.all(jnp.isfinite(out)))
    ref = cfc_forward_ref(x, params)
    assert jnp.allclose(out, ref, atol=2e-3, rtol=2e-3), float(
        jnp.max(jnp.abs(out - ref)))
    print("KERNEL_OK")
</pallas_src>

<mosaic_0001>
module attributes {stable_mosaic.version = 11 : i64} {
  func.func @_lecun_kernel(%arg0: i32, %arg1: i32, %arg2: memref<8x128xf32, #tpu.memory_space<vmem>>, %arg3: memref<8x128xf32, #tpu.memory_space<vmem>>) attributes {dimension_semantics = [#tpu.dimension_semantics<parallel>, #tpu.dimension_semantics<parallel>], iteration_bounds = array<i64: 1, 1>, scalar_prefetch = 0 : i64, scratch_operands = 0 : i64, tpu.core_type = #tpu.core_type<tc>, window_params = [{transform_indices = @transform_0, window_bounds = array<i64: 8, 128>}, {transform_indices = @transform_1, window_bounds = array<i64: 8, 128>}]} {
    %c0 = arith.constant 0 : index
    %c0_0 = arith.constant 0 : index
    %0 = vector.load %arg2[%c0, %c0_0] : memref<8x128xf32, #tpu.memory_space<vmem>>, vector<8x128xf32>
    %cst = arith.constant 6.660000e-01 : f32
    %1 = vector.broadcast %cst : f32 to vector<8x128xf32>
    %2 = arith.mulf %1, %0 : vector<8x128xf32>
    %3 = math.tanh %2 : vector<8x128xf32>
    %cst_1 = arith.constant 1.715900e+00 : f32
    %4 = vector.broadcast %cst_1 : f32 to vector<8x128xf32>
    %5 = arith.mulf %4, %3 : vector<8x128xf32>
    %c0_2 = arith.constant 0 : index
    %c0_3 = arith.constant 0 : index
    %6 = vector.load %arg3[%c0_2, %c0_3] : memref<8x128xf32, #tpu.memory_space<vmem>>, vector<8x128xf32>
    tpu.vector_store %arg3[%c0_2, %c0_3], %5 {strides = array<i32>} : memref<8x128xf32, #tpu.memory_space<vmem>>, vector<8x128xf32>,
    return
  }
  func.func @transform_0(%arg0: i32, %arg1: i32) -> (i32, i32) {
    %c0_i32 = arith.constant 0 : i32
    return %arg0, %arg1 : i32, i32
  }
  func.func @transform_1(%arg0: i32, %arg1: i32) -> (i32, i32) {
    %c0_i32 = arith.constant 0 : i32
    return %arg0, %arg1 : i32, i32
  }
}

</mosaic_0001>

<llo_original>
// kernel: lecun_apply.1
$region0: #{lecun_apply.1}
  #allocation0 [shape = 'u32[]', space=smem, size = 0x4, offset = 0x4, fixed_abs, tag = 'smem constant byte address 0x4 - core index']
  #allocation1 [shape = 'u32[144,128]{1,0:T(1,128)}', space=vmem, size = 0x12000, scoped, tag = 'internal scratch']
  %s0 = inlined_call_operand.hbm [shape: f32[8,128], index: 0, kind: input, shape index: {}]
  %s1 = inlined_call_operand.hbm [shape: f32[8,128], index: 1, kind: output, shape index: {}]
  %s2 = sld [smem:[#allocation0]]
  $region18: #{lecun_apply.1} parent=0
    _
  %s4 = ssub.s32 1, %s2
  %s5 = scalar_select 0, %s4, %s2
  $region1: #{lecun_apply.1} parent=0
    #allocation2 [shape = 'u8[4096]{0}', space=vmem, size = 0x1000, scoped, tag = 'input window, operand 0, single buffered']
    #allocation3 [shape = 's32[1]{0}', space=sflag, size = 0x4, scoped, tag = 'scoped memory for lecun_apply.1']
    #allocation4 [shape = 's32[1]{0}', space=sflag, size = 0x4, scoped, tag = 'scoped memory for lecun_apply.1']
    #allocation5 [shape = 'u8[4096]{0}', space=vmem, size = 0x1000, scoped, tag = 'output window, operand 0, single buffered']
    %6 = vsyncpa [#allocation3], 0
    %7 = vsyncpa [#allocation4], 0
    // Predicated region
    $region2: #{lecun_apply.1} parent=1 // pred_check
      _
    $region3: #{lecun_apply.1} parent=1 // pred_check_branch
      %9 = sbr.rel (0) target = $region5
    $region4: #{lecun_apply.1} parent=1 // pred_region
      %s11 = ssub.s32 128, 128
      %12 = vsyncadd [#allocation3], %s11
      %s14 = sshll.u32 [#allocation2], 4
      %s15 = int_to_ptr.vmem [resolvable:$true] %s14
      %17 = dma.hbm_to_vmem [thread:$0]  %s0, 128, %s15, [#allocation3]
    $region5: #{lecun_apply.1} parent=1 // pred_fallthru
      _
    // Predicated region
    $region6: #{lecun_apply.1} parent=1 // pred_check
      _
    $region7: #{lecun_apply.1} parent=1 // pred_check_branch
      %19 = sbr.rel (0) target = $region9
    $region8: #{lecun_apply.1} parent=1 // pred_region
      %20 = dma.done [#allocation3], 128
    $region9: #{lecun_apply.1} parent=1 // pred_fallthru
      _
    %v21 = vld [vmem:[#allocation2] sm:$0xff]
    %v22 = vmul.f32 %v21, 0.666
    %v23 = vtanh.pop %v22
    %v24 = vmul.f32 %v23, 1.7159
    %25 = vst [vmem:[#allocation5] sm:$0xff] %v24
    // Predicated region
    $region10: #{lecun_apply.1} parent=1 // pred_check
      _
    $region11: #{lecun_apply.1} parent=1 // pred_check_branch
      %27 = sbr.rel (0) target = $region13
    $region12: #{lecun_apply.1} parent=1 // pred_region
      %s29 = ssub.s32 128, 128
      %30 = vsyncadd [#allocation4], %s29
      %s32 = sshll.u32 [#allocation5], 4
      %s33 = int_to_ptr.vmem [resolvable:$true] %s32
      %35 = dma.vmem_to_hbm [thread:$0]  %s33, 128, %s1, [#allocation4]
    $region13: #{lecun_apply.1} parent=1 // pred_fallthru
      _
    // Predicated region
    $region14: #{lecun_apply.1} parent=1 // pred_check
      _
    $region15: #{lecun_apply.1} parent=1 // pred_check_branch
      %37 = sbr.rel (0) target = $region17
    $region16: #{lecun_apply.1} parent=1 // pred_region
      %38 = dma.done [#allocation4], 128
    $region17: #{lecun_apply.1} parent=1 // pred_fallthru
      _
    %39 = vsyncpa [#allocation3], 1
    %40 = vsyncpa [#allocation4], 1

</llo_original>
